<compile_context>
chip_gen: v5e
topology: v5e:2x2
jax: 0.10.0
libtpu: 0.0.40
codegen_flags: <defaults>
</compile_context>

<pallas_src>
import functools

import jax
import jax.numpy as jnp
from jax.experimental import pallas as pl
from jax.experimental.pallas import tpu as pltpu

EPS = 1e-5  # torch.nn.LayerNorm default


def _layer_norm(y, gamma, beta, c_real, c_pad):
    # y: (B, c_pad) float32; padded lanes of y (if any) are exactly zero since
    # the padded W columns and bias are zero.  gamma/beta: (1, c_pad) float32.
    if c_real == c_pad:
        mean = jnp.mean(y, axis=-1, keepdims=True)
        d = y - mean
    else:
        inv_c = 1.0 / c_real
        mean = jnp.sum(y, axis=-1, keepdims=True) * inv_c  # padded lanes contribute 0
        mask = jax.lax.broadcasted_iota(jnp.int32, (1, c_pad), 1) < c_real
        d = jnp.where(mask, y - mean, 0.0)
    var = jnp.sum(d * d, axis=-1, keepdims=True) * (1.0 / c_real)
    inv = jax.lax.rsqrt(var + EPS)
    return d * inv * gamma + beta


def _fused_proj_norm_kernel(x_ref, w_ref, b_ref, g_ref, beta_ref, o_ref, *, T, Cp, C):
    # Single grid step.  Per-token compute keeps the live f32 tile at (B, Cp)
    # (a handful of vregs) instead of materializing a full (B, T*Cp) y.
    x = x_ref[...]
    g = g_ref[...]
    bt = beta_ref[...]
    for t in range(T):
        sl = slice(t * Cp, (t + 1) * Cp)  # static, 128-aligned lane slice
        y = jnp.dot(x, w_ref[:, sl], preferred_element_type=jnp.float32) + b_ref[:, sl]
        o_ref[:, sl] = _layer_norm(y, g, bt, C, Cp).astype(o_ref.dtype)


def _token_stream_kernel(x_ref, w_ref, b_ref, g_ref, beta_ref, o_ref, *, C, Cp):
    # grid = (T,): each step streams one (d_in, Cp) column block of W, does one
    # MXU matmul and the LayerNorm epilogue.  No accumulator, no pl.when phases.
    y = jnp.dot(x_ref[...], w_ref[...], preferred_element_type=jnp.float32) + b_ref[...]
    o_ref[...] = _layer_norm(y, g_ref[...], beta_ref[...], C, Cp).astype(o_ref.dtype)


def _round_up(n, m):
    return ((n + m - 1) // m) * m


def _vmem_limit_bytes(estimate):
    # Headroom over the static (already double-buffer-accounted) estimate,
    # floor 16 MiB, capped well under v7x's 64 MiB physical VMEM.
    return int(min(max(int(1.5 * estimate), 16 * 1024 * 1024), 48 * 1024 * 1024))


def image_proj_model_forward(image_embeds, w, b, gamma, beta,
                             clip_extra_context_tokens, cross_attention_dim,
                             *, fused_vmem_budget_bytes=32 * 1024 * 1024):
    """image_embeds: (B, clip_embeddings_dim) -> (B, tokens, cross_attention_dim).

    w: (clip_embeddings_dim, tokens*cross_attention_dim)  (transposed vs PyTorch).
    w may be bfloat16 to halve HBM traffic (the kernel is W-bandwidth-bound);
    accumulation stays in float32.  For CFG cond/uncond pairs, concatenate along
    batch and make one call: W is streamed from HBM once per call regardless of B.
    """
    B, d_in = image_embeds.shape
    T = clip_extra_context_tokens
    C = cross_attention_dim
    assert w.shape == (d_in, T * C)
    out_dtype = image_embeds.dtype

    # Lane-align C: zero-pad each token's column slab (and bias/gamma/beta) to
    # the next multiple of 128 so every load/store is unmasked and lane-dense.
    # LayerNorm statistics only use the real C lanes; padding is sliced off after.
    Cp = max(_round_up(C, 128), 128)
    if Cp != C:
        w = jnp.pad(w.reshape(d_in, T, C),
                    ((0, 0), (0, 0), (0, Cp - C))).reshape(d_in, T * Cp)
        b = jnp.pad(b.reshape(T, C), ((0, 0), (0, Cp - C))).reshape(T * Cp)
        gamma = jnp.pad(gamma, (0, Cp - C))
        beta = jnp.pad(beta, (0, Cp - C))

    # Cast x to the (possibly narrower) weight dtype for a single clean MXU pass.
    x = image_embeds
    if jnp.dtype(w.dtype).itemsize < jnp.dtype(x.dtype).itemsize:
        x = x.astype(w.dtype)

    b2 = b.reshape(1, T * Cp).astype(jnp.float32)
    g2 = gamma.reshape(1, Cp).astype(jnp.float32)
    beta2 = beta.reshape(1, Cp).astype(jnp.float32)

    x_isz = jnp.dtype(x.dtype).itemsize
    w_isz = jnp.dtype(w.dtype).itemsize
    o_isz = jnp.dtype(out_dtype).itemsize
    w_bytes = d_in * T * Cp * w_isz
    cost = pl.CostEstimate(
        flops=2 * B * d_in * T * Cp,
        transcendentals=0,
        bytes_accessed=(B * d_in * x_isz + w_bytes
                        + (T * Cp + 2 * Cp) * 4 + B * T * Cp * o_isz),
    )

    # Fused single-step path if the *double-buffered* footprint fits the budget
    # (BlockSpec inputs/outputs are double-buffered by default, so account 2x).
    fused_vmem_est = (2 * (B * d_in * x_isz + w_bytes + T * Cp * 4 + 2 * Cp * 4
                           + B * T * Cp * o_isz) + B * Cp * 4)

    if fused_vmem_est <= fused_vmem_budget_bytes:
        out_flat = pl.pallas_call(
            functools.partial(_fused_proj_norm_kernel, T=T, Cp=Cp, C=C),
            out_shape=jax.ShapeDtypeStruct((B, T * Cp), out_dtype),
            grid_spec=pltpu.PrefetchScalarGridSpec(
                num_scalar_prefetch=0,
                grid=(1,),
                in_specs=[
                    pl.BlockSpec((B, d_in), lambda i: (0, 0)),       # x (full)
                    pl.BlockSpec((d_in, T * Cp), lambda i: (0, 0)),  # full W
                    pl.BlockSpec((1, T * Cp), lambda i: (0, 0)),     # bias
                    pl.BlockSpec((1, Cp), lambda i: (0, 0)),         # gamma
                    pl.BlockSpec((1, Cp), lambda i: (0, 0)),         # beta
                ],
                out_specs=pl.BlockSpec((B, T * Cp), lambda i: (0, 0)),
            ),
            compiler_params=pltpu.CompilerParams(
                dimension_semantics=("arbitrary",),
                vmem_limit_bytes=_vmem_limit_bytes(fused_vmem_est)),
            cost_estimate=cost,
        )(x, w, b2, g2, beta2)
    else:
        # W-streaming path: x resident (constant block index -> fetched once);
        # W streams as T large (d_in, Cp) column blocks (each W byte read once,
        # so few big DMAs is all that matters).  T is "parallel" so v7x's two
        # TensorCores split the stream.
        stream_est = (2 * (B * d_in * x_isz + d_in * Cp * w_isz + Cp * 4
                           + B * Cp * o_isz) + 2 * Cp * 4 + B * Cp * 4)
        out_flat = pl.pallas_call(
            functools.partial(_token_stream_kernel, C=C, Cp=Cp),
            out_shape=jax.ShapeDtypeStruct((B, T * Cp), out_dtype),
            grid_spec=pltpu.PrefetchScalarGridSpec(
                num_scalar_prefetch=0,
                grid=(T,),
                in_specs=[
                    pl.BlockSpec((B, d_in), lambda t: (0, 0)),    # x (resident)
                    pl.BlockSpec((d_in, Cp), lambda t: (0, t)),   # W token block
                    pl.BlockSpec((1, Cp), lambda t: (0, t)),      # bias token slab
                    pl.BlockSpec((1, Cp), lambda t: (0, 0)),      # gamma (resident)
                    pl.BlockSpec((1, Cp), lambda t: (0, 0)),      # beta  (resident)
                ],
                out_specs=pl.BlockSpec((B, Cp), lambda t: (0, t)),
            ),
            compiler_params=pltpu.CompilerParams(
                dimension_semantics=("parallel",),
                vmem_limit_bytes=_vmem_limit_bytes(stream_est)),
            cost_estimate=cost,
        )(x, w, b2, g2, beta2)

    # (B, T*Cp) -> (B, T, Cp): free metadata reshape (lane-dense output slab).
    out = out_flat.reshape(B, T, Cp)
    if Cp != C:
        out = out[:, :, :C]
    return out


def reference_forward(image_embeds, w, b, gamma, beta, T, C):
    y = image_embeds.astype(jnp.float32) @ w.astype(jnp.float32) + b
    y = y.reshape(-1, T, C)
    mean = jnp.mean(y, axis=-1, keepdims=True)
    var = jnp.mean((y - mean) ** 2, axis=-1, keepdims=True)
    return (y - mean) * jax.lax.rsqrt(var + EPS) * gamma + beta


if __name__ == "__main__":
    key = jax.random.PRNGKey(0)

    def make_inputs(k, B, d_in, T, C):
        k_x, k_w, k_b, k_g, k_beta = jax.random.split(k, 5)
        x = jax.random.normal(k_x, (B, d_in), dtype=jnp.float32)
        w = jax.random.normal(k_w, (d_in, T * C), dtype=jnp.float32) * 0.02
        b = jax.random.normal(k_b, (T * C,), dtype=jnp.float32) * 0.01
        gamma = 1.0 + 0.1 * jax.random.normal(k_g, (C,), dtype=jnp.float32)
        beta = 0.1 * jax.random.normal(k_beta, (C,), dtype=jnp.float32)
        return x, w, b, gamma, beta

    k1, k2, k3 = jax.random.split(key, 3)

    # 1) Fused single-grid-step path (small module-like shapes).
    B, d_in, C, T = 2, 64, 128, 4
    x, w, b, gamma, beta = make_inputs(k1, B, d_in, T, C)
    out = jax.block_until_ready(image_proj_model_forward(x, w, b, gamma, beta, T, C))
    ref = reference_forward(x, w, b, gamma, beta, T, C)
    assert out.shape == (B, T, C)
    assert jnp.allclose(out, ref, atol=1e-4, rtol=1e-4)

    # 2) W-streaming (grid=(T,)) path, forced by shrinking the fused budget.
    B2, d_in2, C2, T2 = 8, 256, 256, 4
    x2, w2, b2, g2, bt2 = make_inputs(k2, B2, d_in2, T2, C2)
    out2 = jax.block_until_ready(
        image_proj_model_forward(x2, w2, b2, g2, bt2, T2, C2,
                                 fused_vmem_budget_bytes=0))
    ref2 = reference_forward(x2, w2, b2, g2, bt2, T2, C2)
    assert out2.shape == (B2, T2, C2)
    assert jnp.allclose(out2, ref2, atol=1e-4, rtol=1e-4)

    # 3) Non-128-multiple cross_attention_dim -> lane-padding path.
    B3, d_in3, C3, T3 = 2, 64, 96, 4
    x3, w3, b3, g3, bt3 = make_inputs(k3, B3, d_in3, T3, C3)
    out3 = jax.block_until_ready(image_proj_model_forward(x3, w3, b3, g3, bt3, T3, C3))
    ref3 = reference_forward(x3, w3, b3, g3, bt3, T3, C3)
    assert out3.shape == (B3, T3, C3)
    assert jnp.allclose(out3, ref3, atol=1e-4, rtol=1e-4)

    print("KERNEL_OK")
</pallas_src>

<mosaic_0001>
module attributes {stable_mosaic.version = 11 : i64} {
  func.func @_fused_proj_norm_kernel(%arg0: i32, %arg1: memref<2x64xf32, #tpu.memory_space<vmem>>, %arg2: memref<64x512xf32, #tpu.memory_space<vmem>>, %arg3: memref<1x512xf32, #tpu.memory_space<vmem>>, %arg4: memref<1x128xf32, #tpu.memory_space<vmem>>, %arg5: memref<1x128xf32, #tpu.memory_space<vmem>>, %arg6: memref<2x512xf32, #tpu.memory_space<vmem>>) attributes {dimension_semantics = [#tpu.dimension_semantics<arbitrary>], iteration_bounds = array<i64: 1>, scalar_prefetch = 0 : i64, scratch_operands = 0 : i64, tpu.core_type = #tpu.core_type<tc>, window_params = [{pipeline_mode = #tpu.pipeline_mode<synchronous>, transform_indices = @transform_0, window_bounds = array<i64: 2, 64>}, {pipeline_mode = #tpu.pipeline_mode<synchronous>, transform_indices = @transform_1, window_bounds = array<i64: 64, 512>}, {pipeline_mode = #tpu.pipeline_mode<synchronous>, transform_indices = @transform_2, window_bounds = array<i64: 1, 512>}, {pipeline_mode = #tpu.pipeline_mode<synchronous>, transform_indices = @transform_3, window_bounds = array<i64: 1, 128>}, {pipeline_mode = #tpu.pipeline_mode<synchronous>, transform_indices = @transform_4, window_bounds = array<i64: 1, 128>}, {pipeline_mode = #tpu.pipeline_mode<synchronous>, transform_indices = @transform_5, window_bounds = array<i64: 2, 512>}]} {
    %c0 = arith.constant 0 : index
    %c0_0 = arith.constant 0 : index
    %0 = vector.load %arg1[%c0, %c0_0] : memref<2x64xf32, #tpu.memory_space<vmem>>, vector<2x64xf32>
    %c0_1 = arith.constant 0 : index
    %c0_2 = arith.constant 0 : index
    %1 = vector.load %arg4[%c0_1, %c0_2] : memref<1x128xf32, #tpu.memory_space<vmem>>, vector<1x128xf32>
    %c0_3 = arith.constant 0 : index
    %c0_4 = arith.constant 0 : index
    %2 = vector.load %arg5[%c0_3, %c0_4] : memref<1x128xf32, #tpu.memory_space<vmem>>, vector<1x128xf32>
    %c0_5 = arith.constant 0 : index
    %c0_6 = arith.constant 0 : index
    %3 = vector.load %arg2[%c0_5, %c0_6] : memref<64x512xf32, #tpu.memory_space<vmem>>, vector<64x128xf32>
    %cst = arith.constant dense<0.000000e+00> : vector<2x128xf32>
    %4 = tpu.matmul %0, %3, %cst {dimension_numbers = #tpu.dot_dimension_numbers<[1], [0], [0], [1], [0, 0, 1, 1], [], []>} : vector<2x64xf32>, vector<64x128xf32>, vector<2x128xf32> -> vector<2x128xf32>
    %c0_7 = arith.constant 0 : index
    %c0_8 = arith.constant 0 : index
    %5 = vector.load %arg3[%c0_7, %c0_8] : memref<1x512xf32, #tpu.memory_space<vmem>>, vector<1x128xf32>
    %6 = vector.broadcast %5 : vector<1x128xf32> to vector<2x128xf32>
    %7 = arith.addf %4, %6 : vector<2x128xf32>
    %cst_9 = arith.constant dense<0.000000e+00> : vector<2xf32>
    %8 = vector.multi_reduction <add>, %7, %cst_9 [1] : vector<2x128xf32> to vector<2xf32>
    %9 = vector.shape_cast %8 : vector<2xf32> to vector<2x1xf32>
    %cst_10 = arith.constant 1.280000e+02 : f32
    %10 = vector.broadcast %cst_10 : f32 to vector<2x1xf32>
    %11 = arith.divf %9, %10 : vector<2x1xf32>
    %12 = vector.broadcast %11 : vector<2x1xf32> to vector<2x128xf32>
    %13 = arith.subf %7, %12 : vector<2x128xf32>
    %14 = arith.mulf %13, %13 : vector<2x128xf32>
    %cst_11 = arith.constant dense<0.000000e+00> : vector<2xf32>
    %15 = vector.multi_reduction <add>, %14, %cst_11 [1] : vector<2x128xf32> to vector<2xf32>
    %16 = vector.shape_cast %15 : vector<2xf32> to vector<2x1xf32>
    %cst_12 = arith.constant 7.812500e-03 : f32
    %17 = vector.broadcast %cst_12 : f32 to vector<2x1xf32>
    %18 = arith.mulf %16, %17 : vector<2x1xf32>
    %cst_13 = arith.constant 9.99999974E-6 : f32
    %19 = vector.broadcast %cst_13 : f32 to vector<2x1xf32>
    %20 = arith.addf %18, %19 : vector<2x1xf32>
    %21 = math.rsqrt %20 : vector<2x1xf32>
    %22 = vector.broadcast %21 : vector<2x1xf32> to vector<2x128xf32>
    %23 = arith.mulf %13, %22 : vector<2x128xf32>
    %24 = vector.broadcast %1 : vector<1x128xf32> to vector<2x128xf32>
    %25 = arith.mulf %23, %24 : vector<2x128xf32>
    %26 = vector.broadcast %2 : vector<1x128xf32> to vector<2x128xf32>
    %27 = arith.addf %25, %26 : vector<2x128xf32>
    %c0_14 = arith.constant 0 : index
    %c0_15 = arith.constant 0 : index
    %28 = vector.load %arg6[%c0_14, %c0_15] : memref<2x512xf32, #tpu.memory_space<vmem>>, vector<2x128xf32>
    tpu.vector_store %arg6[%c0_14, %c0_15], %27 {strides = array<i32>} : memref<2x512xf32, #tpu.memory_space<vmem>>, vector<2x128xf32>,
    %c0_16 = arith.constant 0 : index
    %c128 = arith.constant 128 : index
    %29 = vector.load %arg2[%c0_16, %c128] : memref<64x512xf32, #tpu.memory_space<vmem>>, vector<64x128xf32>
    %cst_17 = arith.constant dense<0.000000e+00> : vector<2x128xf32>
    %30 = tpu.matmul %0, %29, %cst_17 {dimension_numbers = #tpu.dot_dimension_numbers<[1], [0], [0], [1], [0, 0, 1, 1], [], []>} : vector<2x64xf32>, vector<64x128xf32>, vector<2x128xf32> -> vector<2x128xf32>
    %c0_18 = arith.constant 0 : index
    %c128_19 = arith.constant 128 : index
    %31 = vector.load %arg3[%c0_18, %c128_19] : memref<1x512xf32, #tpu.memory_space<vmem>>, vector<1x128xf32>
    %32 = vector.broadcast %31 : vector<1x128xf32> to vector<2x128xf32>
    %33 = arith.addf %30, %32 : vector<2x128xf32>
    %cst_20 = arith.constant dense<0.000000e+00> : vector<2xf32>
    %34 = vector.multi_reduction <add>, %33, %cst_20 [1] : vector<2x128xf32> to vector<2xf32>
    %35 = vector.shape_cast %34 : vector<2xf32> to vector<2x1xf32>
    %cst_21 = arith.constant 1.280000e+02 : f32
    %36 = vector.broadcast %cst_21 : f32 to vector<2x1xf32>
    %37 = arith.divf %35, %36 : vector<2x1xf32>
    %38 = vector.broadcast %37 : vector<2x1xf32> to vector<2x128xf32>
    %39 = arith.subf %33, %38 : vector<2x128xf32>
    %40 = arith.mulf %39, %39 : vector<2x128xf32>
    %cst_22 = arith.constant dense<0.000000e+00> : vector<2xf32>
    %41 = vector.multi_reduction <add>, %40, %cst_22 [1] : vector<2x128xf32> to vector<2xf32>
    %42 = vector.shape_cast %41 : vector<2xf32> to vector<2x1xf32>
    %cst_23 = arith.constant 7.812500e-03 : f32
    %43 = vector.broadcast %cst_23 : f32 to vector<2x1xf32>
    %44 = arith.mulf %42, %43 : vector<2x1xf32>
    %cst_24 = arith.constant 9.99999974E-6 : f32
    %45 = vector.broadcast %cst_24 : f32 to vector<2x1xf32>
    %46 = arith.addf %44, %45 : vector<2x1xf32>
    %47 = math.rsqrt %46 : vector<2x1xf32>
    %48 = vector.broadcast %47 : vector<2x1xf32> to vector<2x128xf32>
    %49 = arith.mulf %39, %48 : vector<2x128xf32>
    %50 = vector.broadcast %1 : vector<1x128xf32> to vector<2x128xf32>
    %51 = arith.mulf %49, %50 : vector<2x128xf32>
    %52 = vector.broadcast %2 : vector<1x128xf32> to vector<2x128xf32>
    %53 = arith.addf %51, %52 : vector<2x128xf32>
    %c0_25 = arith.constant 0 : index
    %c128_26 = arith.constant 128 : index
    %54 = vector.load %arg6[%c0_25, %c128_26] : memref<2x512xf32, #tpu.memory_space<vmem>>, vector<2x128xf32>
    tpu.vector_store %arg6[%c0_25, %c128_26], %53 {strides = array<i32>} : memref<2x512xf32, #tpu.memory_space<vmem>>, vector<2x128xf32>,
    %c0_27 = arith.constant 0 : index
    %c256 = arith.constant 256 : index
    %55 = vector.load %arg2[%c0_27, %c256] : memref<64x512xf32, #tpu.memory_space<vmem>>, vector<64x128xf32>
    %cst_28 = arith.constant dense<0.000000e+00> : vector<2x128xf32>
    %56 = tpu.matmul %0, %55, %cst_28 {dimension_numbers = #tpu.dot_dimension_numbers<[1], [0], [0], [1], [0, 0, 1, 1], [], []>} : vector<2x64xf32>, vector<64x128xf32>, vector<2x128xf32> -> vector<2x128xf32>
    %c0_29 = arith.constant 0 : index
    %c256_30 = arith.constant 256 : index
    %57 = vector.load %arg3[%c0_29, %c256_30] : memref<1x512xf32, #tpu.memory_space<vmem>>, vector<1x128xf32>
    %58 = vector.broadcast %57 : vector<1x128xf32> to vector<2x128xf32>
    %59 = arith.addf %56, %58 : vector<2x128xf32>
    %cst_31 = arith.constant dense<0.000000e+00> : vector<2xf32>
    %60 = vector.multi_reduction <add>, %59, %cst_31 [1] : vector<2x128xf32> to vector<2xf32>
    %61 = vector.shape_cast %60 : vector<2xf32> to vector<2x1xf32>
    %cst_32 = arith.constant 1.280000e+02 : f32
    %62 = vector.broadcast %cst_32 : f32 to vector<2x1xf32>
    %63 = arith.divf %61, %62 : vector<2x1xf32>
    %64 = vector.broadcast %63 : vector<2x1xf32> to vector<2x128xf32>
    %65 = arith.subf %59, %64 : vector<2x128xf32>
    %66 = arith.mulf %65, %65 : vector<2x128xf32>
    %cst_33 = arith.constant dense<0.000000e+00> : vector<2xf32>
    %67 = vector.multi_reduction <add>, %66, %cst_33 [1] : vector<2x128xf32> to vector<2xf32>
    %68 = vector.shape_cast %67 : vector<2xf32> to vector<2x1xf32>
    %cst_34 = arith.constant 7.812500e-03 : f32
    %69 = vector.broadcast %cst_34 : f32 to vector<2x1xf32>
    %70 = arith.mulf %68, %69 : vector<2x1xf32>
    %cst_35 = arith.constant 9.99999974E-6 : f32
    %71 = vector.broadcast %cst_35 : f32 to vector<2x1xf32>
    %72 = arith.addf %70, %71 : vector<2x1xf32>
    %73 = math.rsqrt %72 : vector<2x1xf32>
    %74 = vector.broadcast %73 : vector<2x1xf32> to vector<2x128xf32>
    %75 = arith.mulf %65, %74 : vector<2x128xf32>
    %76 = vector.broadcast %1 : vector<1x128xf32> to vector<2x128xf32>
    %77 = arith.mulf %75, %76 : vector<2x128xf32>
    %78 = vector.broadcast %2 : vector<1x128xf32> to vector<2x128xf32>
    %79 = arith.addf %77, %78 : vector<2x128xf32>
    %c0_36 = arith.constant 0 : index
    %c256_37 = arith.constant 256 : index
    %80 = vector.load %arg6[%c0_36, %c256_37] : memref<2x512xf32, #tpu.memory_space<vmem>>, vector<2x128xf32>
    tpu.vector_store %arg6[%c0_36, %c256_37], %79 {strides = array<i32>} : memref<2x512xf32, #tpu.memory_space<vmem>>, vector<2x128xf32>,
    %c0_38 = arith.constant 0 : index
    %c384 = arith.constant 384 : index
    %81 = vector.load %arg2[%c0_38, %c384] : memref<64x512xf32, #tpu.memory_space<vmem>>, vector<64x128xf32>
    %cst_39 = arith.constant dense<0.000000e+00> : vector<2x128xf32>
    %82 = tpu.matmul %0, %81, %cst_39 {dimension_numbers = #tpu.dot_dimension_numbers<[1], [0], [0], [1], [0, 0, 1, 1], [], []>} : vector<2x64xf32>, vector<64x128xf32>, vector<2x128xf32> -> vector<2x128xf32>
    %c0_40 = arith.constant 0 : index
    %c384_41 = arith.constant 384 : index
    %83 = vector.load %arg3[%c0_40, %c384_41] : memref<1x512xf32, #tpu.memory_space<vmem>>, vector<1x128xf32>
    %84 = vector.broadcast %83 : vector<1x128xf32> to vector<2x128xf32>
    %85 = arith.addf %82, %84 : vector<2x128xf32>
    %cst_42 = arith.constant dense<0.000000e+00> : vector<2xf32>
    %86 = vector.multi_reduction <add>, %85, %cst_42 [1] : vector<2x128xf32> to vector<2xf32>
    %87 = vector.shape_cast %86 : vector<2xf32> to vector<2x1xf32>
    %cst_43 = arith.constant 1.280000e+02 : f32
    %88 = vector.broadcast %cst_43 : f32 to vector<2x1xf32>
    %89 = arith.divf %87, %88 : vector<2x1xf32>
    %90 = vector.broadcast %89 : vector<2x1xf32> to vector<2x128xf32>
    %91 = arith.subf %85, %90 : vector<2x128xf32>
    %92 = arith.mulf %91, %91 : vector<2x128xf32>
    %cst_44 = arith.constant dense<0.000000e+00> : vector<2xf32>
    %93 = vector.multi_reduction <add>, %92, %cst_44 [1] : vector<2x128xf32> to vector<2xf32>
    %94 = vector.shape_cast %93 : vector<2xf32> to vector<2x1xf32>
    %cst_45 = arith.constant 7.812500e-03 : f32
    %95 = vector.broadcast %cst_45 : f32 to vector<2x1xf32>
    %96 = arith.mulf %94, %95 : vector<2x1xf32>
    %cst_46 = arith.constant 9.99999974E-6 : f32
    %97 = vector.broadcast %cst_46 : f32 to vector<2x1xf32>
    %98 = arith.addf %96, %97 : vector<2x1xf32>
    %99 = math.rsqrt %98 : vector<2x1xf32>
    %100 = vector.broadcast %99 : vector<2x1xf32> to vector<2x128xf32>
    %101 = arith.mulf %91, %100 : vector<2x128xf32>
    %102 = vector.broadcast %1 : vector<1x128xf32> to vector<2x128xf32>
    %103 = arith.mulf %101, %102 : vector<2x128xf32>
    %104 = vector.broadcast %2 : vector<1x128xf32> to vector<2x128xf32>
    %105 = arith.addf %103, %104 : vector<2x128xf32>
    %c0_47 = arith.constant 0 : index
    %c384_48 = arith.constant 384 : index
    %106 = vector.load %arg6[%c0_47, %c384_48] : memref<2x512xf32, #tpu.memory_space<vmem>>, vector<2x128xf32>
    tpu.vector_store %arg6[%c0_47, %c384_48], %105 {strides = array<i32>} : memref<2x512xf32, #tpu.memory_space<vmem>>, vector<2x128xf32>,
    return
  }
  func.func @transform_0(%arg0: i32) -> (i32, i32) {
    %c0_i32 = arith.constant 0 : i32
    %c0_i32_0 = arith.constant 0 : i32
    %c0_i32_1 = arith.constant 0 : i32
    return %c0_i32, %c0_i32_0 : i32, i32
  }
  func.func @transform_1(%arg0: i32) -> (i32, i32) {
    %c0_i32 = arith.constant 0 : i32
    %c0_i32_0 = arith.constant 0 : i32
    %c0_i32_1 = arith.constant 0 : i32
    return %c0_i32, %c0_i32_0 : i32, i32
  }
  func.func @transform_2(%arg0: i32) -> (i32, i32) {
    %c0_i32 = arith.constant 0 : i32
    %c0_i32_0 = arith.constant 0 : i32
    %c0_i32_1 = arith.constant 0 : i32
    return %c0_i32, %c0_i32_0 : i32, i32
  }
  func.func @transform_3(%arg0: i32) -> (i32, i32) {
    %c0_i32 = arith.constant 0 : i32
    %c0_i32_0 = arith.constant 0 : i32
    %c0_i32_1 = arith.constant 0 : i32
    return %c0_i32, %c0_i32_0 : i32, i32
  }
  func.func @transform_4(%arg0: i32) -> (i32, i32) {
    %c0_i32 = arith.constant 0 : i32
    %c0_i32_0 = arith.constant 0 : i32
    %c0_i32_1 = arith.constant 0 : i32
    return %c0_i32, %c0_i32_0 : i32, i32
  }
  func.func @transform_5(%arg0: i32) -> (i32, i32) {
    %c0_i32 = arith.constant 0 : i32
    %c0_i32_0 = arith.constant 0 : i32
    %c0_i32_1 = arith.constant 0 : i32
    return %c0_i32, %c0_i32_0 : i32, i32
  }
}

</mosaic_0001>

<llo_original>
// kernel: tpu_custom_call.1
$region0: #{tpu_custom_call.1}
  #allocation0 [shape = 'u32[]', space=smem, size = 0x4, offset = 0x4, fixed_abs, tag = 'smem constant byte address 0x4 - core index']
  #allocation1 [shape = 'u32[72,128]{1,0:T(1,128)}', space=vmem, size = 0x9000, scoped, tag = 'internal scratch']
  %s0 = inlined_call_operand.hbm [shape: f32[2,64], index: 0, kind: input, shape index: {}]
  %s1 = inlined_call_operand.hbm [shape: f32[64,512], index: 1, kind: input, shape index: {}]
  %s2 = inlined_call_operand.hbm [shape: f32[1,512], index: 2, kind: input, shape index: {}]
  %s3 = inlined_call_operand.vmem [shape: f32[1,128], index: 3, kind: input, shape index: {}]
  %s4 = inlined_call_operand.vmem [shape: f32[1,128], index: 4, kind: input, shape index: {}]
  %s5 = inlined_call_operand.hbm [shape: f32[2,512], index: 5, kind: output, shape index: {}]
  %s6 = sld [smem:[#allocation0]]
  $region42: #{tpu_custom_call.1} parent=0
    _
  %s8 = ssub.s32 1, %s6
  %s9 = scalar_select 0, %s8, %s6
  $region1: #{tpu_custom_call.1} parent=0
    #allocation2 [shape = 'u8[1024]{0}', space=vmem, size = 0x400, scoped, tag = 'input window, operand 0, single buffered']
    #allocation3 [shape = 's32[1]{0}', space=sflag, size = 0x4, scoped, tag = 'scoped memory for tpu_custom_call.1']
    #allocation4 [shape = 's32[1]{0}', space=sflag, size = 0x4, scoped, tag = 'scoped memory for tpu_custom_call.1']
    #allocation5 [shape = 'u8[131072]{0}', space=vmem, size = 0x20000, scoped, tag = 'input window, operand 1, single buffered']
    #allocation6 [shape = 's32[1]{0}', space=sflag, size = 0x4, scoped, tag = 'scoped memory for tpu_custom_call.1']
    #allocation7 [shape = 'u8[2048]{0}', space=vmem, size = 0x800, scoped, tag = 'input window, operand 2, single buffered']
    #allocation8 [shape = 'u8[4096]{0}', space=vmem, size = 0x1000, scoped, tag = 'output window, operand 0, single buffered']
    %10 = vsyncpa [#allocation3], 0
    %11 = vsyncpa [#allocation6], 0
    %12 = vsyncpa [#allocation4], 0
    // Predicated region
    $region2: #{tpu_custom_call.1} parent=1 // pred_check
      _
    $region3: #{tpu_custom_call.1} parent=1 // pred_check_branch
      %14 = sbr.rel (0) target = $region5
    $region4: #{tpu_custom_call.1} parent=1 // pred_region
      %16 = vsyncadd [#allocation3], 0
      %s18 = sshll.u32 %s0, 4
      %s19 = int_to_ptr.hbm [resolvable:$true] %s18
      %s20 = sshll.u32 [#allocation2], 4
      %s21 = int_to_ptr.vmem [resolvable:$true] %s20
      %23 = dma.hbm_to_vmem [thread:$0]  %s19, 32, %s21, [#allocation3]
    $region5: #{tpu_custom_call.1} parent=1 // pred_fallthru
      _
    // Predicated region
    $region6: #{tpu_custom_call.1} parent=1 // pred_check
      _
    $region7: #{tpu_custom_call.1} parent=1 // pred_check_branch
      %25 = sbr.rel (0) target = $region9
    $region8: #{tpu_custom_call.1} parent=1 // pred_region
      %27 = vsyncadd [#allocation6], 0
      %s28 = sshll.u32 %s1, 4
      %s29 = int_to_ptr.hbm [resolvable:$true] %s28
      %s30 = sshll.u32 [#allocation5], 4
      %s31 = int_to_ptr.vmem [resolvable:$true] %s30
      %36 = dma.hbm_to_vmem [thread:$0]  %s29, 4096, %s31, [#allocation6], 512, 512, 32
    $region9: #{tpu_custom_call.1} parent=1 // pred_fallthru
      _
    // Predicated region
    $region10: #{tpu_custom_call.1} parent=1 // pred_check
      _
    $region11: #{tpu_custom_call.1} parent=1 // pred_check_branch
      %38 = sbr.rel (0) target = $region13
    $region12: #{tpu_custom_call.1} parent=1 // pred_region
      %40 = vsyncadd [#allocation6], 0
      %s42 = sshll.u32 %s2, 4
      %s43 = int_to_ptr.hbm [resolvable:$true] %s42
      %s44 = sshll.u32 [#allocation7], 4
      %s45 = int_to_ptr.vmem [resolvable:$true] %s44
      %47 = dma.hbm_to_vmem [thread:$0]  %s43, 64, %s45, [#allocation6]
    $region13: #{tpu_custom_call.1} parent=1 // pred_fallthru
      _
    // Predicated region
    $region14: #{tpu_custom_call.1} parent=1 // pred_check
      _
    $region15: #{tpu_custom_call.1} parent=1 // pred_check_branch
      %49 = sbr.rel (0) target = $region17
    $region16: #{tpu_custom_call.1} parent=1 // pred_region
      _
    $region17: #{tpu_custom_call.1} parent=1 // pred_fallthru
      _
    // Predicated region
    $region18: #{tpu_custom_call.1} parent=1 // pred_check
      _
    $region19: #{tpu_custom_call.1} parent=1 // pred_check_branch
      %51 = sbr.rel (0) target = $region21
    $region20: #{tpu_custom_call.1} parent=1 // pred_region
      _
    $region21: #{tpu_custom_call.1} parent=1 // pred_fallthru
      _
    // Predicated region
    $region22: #{tpu_custom_call.1} parent=1 // pred_check
      _
    $region23: #{tpu_custom_call.1} parent=1 // pred_check_branch
      %53 = sbr.rel (0) target = $region25
    $region24: #{tpu_custom_call.1} parent=1 // pred_region
      %55 = dma.done [#allocation3], 32
    $region25: #{tpu_custom_call.1} parent=1 // pred_fallthru
      _
    // Predicated region
    $region26: #{tpu_custom_call.1} parent=1 // pred_check
      _
    $region27: #{tpu_custom_call.1} parent=1 // pred_check_branch
      %57 = sbr.rel (0) target = $region29
    $region28: #{tpu_custom_call.1} parent=1 // pred_region
      %59 = dma.done [#allocation6], 4096
    $region29: #{tpu_custom_call.1} parent=1 // pred_fallthru
      _
    // Predicated region
    $region30: #{tpu_custom_call.1} parent=1 // pred_check
      _
    $region31: #{tpu_custom_call.1} parent=1 // pred_check_branch
      %61 = sbr.rel (0) target = $region33
    $region32: #{tpu_custom_call.1} parent=1 // pred_region
      %63 = dma.done [#allocation6], 64
    $region33: #{tpu_custom_call.1} parent=1 // pred_fallthru
      _
    %v64 = vld [vmem:[#allocation2] sm:$0x3]
    %v65 = vld [vmem:[%s3] sm:$0x1]
    %v66 = vld [vmem:[%s4] sm:$0x1]
    %v67 = vld [vmem:[#allocation5] sm:$0xff]
    %v68 = vld [vmem:[#allocation5 + $0x20] sm:$0xff]
    %v69 = vld [vmem:[#allocation5 + $0x40] sm:$0xff]
    %v70 = vld [vmem:[#allocation5 + $0x60] sm:$0xff]
    %v71 = vld [vmem:[#allocation5 + $0x80] sm:$0xff]
    %v72 = vld [vmem:[#allocation5 + $0xa0] sm:$0xff]
    %v73 = vld [vmem:[#allocation5 + $0xc0] sm:$0xff]
    %v74 = vld [vmem:[#allocation5 + $0xe0] sm:$0xff]
    %v75 = vld [vmem:[#allocation7] sm:$0x1]
    %v77 = vperm.slane %v75, 0
    %vm79 = vcmask 523264
    %v81 = vsel %vm79, %v64, 0
    %83 = vmatpush.msra.mxu0 0.0
    %84 = vmatpush.msra.mxu0 0.0
    %85 = vmatpush.msra.mxu0 0.0
    %86 = vmatpush.msra.mxu0 0.0
    %87 = vmatpush.msra.mxu0 0.0
    %88 = vmatpush.msra.mxu0 0.0
    %89 = vmatpush.msra.mxu0 0.0
    %90 = vmatpush.msra.mxu0 0.0
    %91 = vmatpush.msra.mxu0 %v74
    %92 = vmatpush.msra.mxu0 %v73
    %93 = vmatpush.msra.mxu0 %v72
    %94 = vmatpush.msra.mxu0 %v71
    %95 = vmatpush.msra.mxu0 %v70
    %96 = vmatpush.msra.mxu0 %v69
    %97 = vmatpush.msra.mxu0 %v68
    %98 = vmatpush.msra.mxu0 %v67
    %99 = vmatmul.f32.gmra.mxu0 %v81
    %v100 = vpop.f32.mrf.mxu0
    %v101 = vadd.f32 %v77, %v100
    %102 = vdwg.mxu0
    %vm103 = vcmask 1041408
    %v104 = vsel %vm103, %v101, 0.0
    %105 = vadd.xlane.f32.xlu0 %v104
    %v106 = vpop.xlane.xlu0 %105
    %v107 = vrcp.pop 128.0
    %v108 = vmul.f32 128.0, %v107
    %v109 = vsub.f32 1.0, %v108
    %v110 = vmul.f32 %v107, %v109
    %v111 = vadd.f32 %v107, %v110
    %vm112 = vweird.f32 %v107
    %v113 = vsel %vm112, %v107, %v111
    %v114 = vmul.f32 %v106, %v113
    %v115 = vsub.f32 %v101, %v114
    %v116 = vmul.f32 %v115, %v115
    %v117 = vsel %vm103, %v116, 0.0
    %118 = vadd.xlane.f32.xlu0 %v117
    %v119 = vpop.xlane.xlu0 %118
    %v120 = vmul.f32 %v119, 0.0078125
    %v121 = vadd.f32 %v120, 1e-05
    %v122 = vrsqrt.pop %v121
    %v123 = vmul.f32 %v122, %v121
    %v124 = vmul.f32 %v123, %v122
    %v125 = vmul.f32 0.5, %v124
    %v126 = vsub.f32 1.5, %v125
    %v127 = vmul.f32 %v122, %v126
    %vm128 = vweird.f32 %v121
    %vm129 = vweird.f32 %v122
    %vm130 = vmor %vm128, %vm129
    %v131 = vsel %vm130, %v122, %v127
    %v132 = vmul.f32 %v115, %v131
    %v134 = vperm.slane %v65, 0
    %v136 = vmul.f32 %v132, %v134
    %v138 = vperm.slane %v66, 0
    %v140 = vadd.f32 %v136, %v138
    %141 = vst [vmem:[#allocation8] sm:$0x3] %v140
    %v142 = vld [vmem:[#allocation5 + $0x8] sm:$0xff]
    %v143 = vld [vmem:[#allocation5 + $0x28] sm:$0xff]
    %v144 = vld [vmem:[#allocation5 + $0x48] sm:$0xff]
    %v145 = vld [vmem:[#allocation5 + $0x68] sm:$0xff]
    %v146 = vld [vmem:[#allocation5 + $0x88] sm:$0xff]
    %v147 = vld [vmem:[#allocation5 + $0xa8] sm:$0xff]
    %v148 = vld [vmem:[#allocation5 + $0xc8] sm:$0xff]
    %v149 = vld [vmem:[#allocation5 + $0xe8] sm:$0xff]
    %v150 = vld [vmem:[#allocation7 + $0x1] sm:$0x1]
    %v152 = vperm.slane %v150, 0
    %154 = vmatpush.msra.mxu0 0.0
    %155 = vmatpush.msra.mxu0 0.0
    %156 = vmatpush.msra.mxu0 0.0
    %157 = vmatpush.msra.mxu0 0.0
    %158 = vmatpush.msra.mxu0 0.0
    %159 = vmatpush.msra.mxu0 0.0
    %160 = vmatpush.msra.mxu0 0.0
    %161 = vmatpush.msra.mxu0 0.0
    %162 = vmatpush.msra.mxu0 %v149
    %163 = vmatpush.msra.mxu0 %v148
    %164 = vmatpush.msra.mxu0 %v147
    %165 = vmatpush.msra.mxu0 %v146
    %166 = vmatpush.msra.mxu0 %v145
    %167 = vmatpush.msra.mxu0 %v144
    %168 = vmatpush.msra.mxu0 %v143
    %169 = vmatpush.msra.mxu0 %v142
    %170 = vmatmul.f32.gmra.mxu0 %v81
    %v171 = vpop.f32.mrf.mxu0
    %v172 = vadd.f32 %v152, %v171
    %173 = vdwg.mxu0
    %v174 = vsel %vm103, %v172, 0.0
    %175 = vadd.xlane.f32.xlu0 %v174
    %v176 = vpop.xlane.xlu0 %175
    %v177 = vmul.f32 %v176, %v113
    %v178 = vsub.f32 %v172, %v177
    %v179 = vmul.f32 %v178, %v178
    %v180 = vsel %vm103, %v179, 0.0
    %181 = vadd.xlane.f32.xlu0 %v180
    %v182 = vpop.xlane.xlu0 %181
    %v183 = vmul.f32 %v182, 0.0078125
    %v184 = vadd.f32 %v183, 1e-05
    %v185 = vrsqrt.pop %v184
    %v186 = vmul.f32 %v185, %v184
    %v187 = vmul.f32 %v186, %v185
    %v188 = vmul.f32 0.5, %v187
    %v189 = vsub.f32 1.5, %v188
    %v190 = vmul.f32 %v185, %v189
    %vm191 = vweird.f32 %v184
    %vm192 = vweird.f32 %v185
    %vm193 = vmor %vm191, %vm192
    %v194 = vsel %vm193, %v185, %v190
    %v195 = vmul.f32 %v178, %v194
    %v196 = vmul.f32 %v195, %v134
    %v197 = vadd.f32 %v196, %v138
    %198 = vst [vmem:[#allocation8 + $0x2] sm:$0x3] %v197
    %v199 = vld [vmem:[#allocation5 + $0x10] sm:$0xff]
    %v200 = vld [vmem:[#allocation5 + $0x30] sm:$0xff]
    %v201 = vld [vmem:[#allocation5 + $0x50] sm:$0xff]
    %v202 = vld [vmem:[#allocation5 + $0x70] sm:$0xff]
    %v203 = vld [vmem:[#allocation5 + $0x90] sm:$0xff]
    %v204 = vld [vmem:[#allocation5 + $0xb0] sm:$0xff]
    %v205 = vld [vmem:[#allocation5 + $0xd0] sm:$0xff]
    %v206 = vld [vmem:[#allocation5 + $0xf0] sm:$0xff]
    %v207 = vld [vmem:[#allocation7 + $0x2] sm:$0x1]
    %v209 = vperm.slane %v207, 0
    %211 = vmatpush.msra.mxu0 0.0
    %212 = vmatpush.msra.mxu0 0.0
    %213 = vmatpush.msra.mxu0 0.0
    %214 = vmatpush.msra.mxu0 0.0
    %215 = vmatpush.msra.mxu0 0.0
    %216 = vmatpush.msra.mxu0 0.0
    %217 = vmatpush.msra.mxu0 0.0
    %218 = vmatpush.msra.mxu0 0.0
    %219 = vmatpush.msra.mxu0 %v206
    %220 = vmatpush.msra.mxu0 %v205
    %221 = vmatpush.msra.mxu0 %v204
    %222 = vmatpush.msra.mxu0 %v203
    %223 = vmatpush.msra.mxu0 %v202
    %224 = vmatpush.msra.mxu0 %v201
    %225 = vmatpush.msra.mxu0 %v200
    %226 = vmatpush.msra.mxu0 %v199
    %227 = vmatmul.f32.gmra.mxu0 %v81
    %v228 = vpop.f32.mrf.mxu0
    %v229 = vadd.f32 %v209, %v228
    %230 = vdwg.mxu0
    %v231 = vsel %vm103, %v229, 0.0
    %232 = vadd.xlane.f32.xlu0 %v231
    %v233 = vpop.xlane.xlu0 %232
    %v234 = vmul.f32 %v233, %v113
    %v235 = vsub.f32 %v229, %v234
    %v236 = vmul.f32 %v235, %v235
    %v237 = vsel %vm103, %v236, 0.0
    %238 = vadd.xlane.f32.xlu0 %v237
    %v239 = vpop.xlane.xlu0 %238
    %v240 = vmul.f32 %v239, 0.0078125
    %v241 = vadd.f32 %v240, 1e-05
    %v242 = vrsqrt.pop %v241
    %v243 = vmul.f32 %v242, %v241
    %v244 = vmul.f32 %v243, %v242
    %v245 = vmul.f32 0.5, %v244
    %v246 = vsub.f32 1.5, %v245
    %v247 = vmul.f32 %v242, %v246
    %vm248 = vweird.f32 %v241
    %vm249 = vweird.f32 %v242
    %vm250 = vmor %vm248, %vm249
    %v251 = vsel %vm250, %v242, %v247
    %v252 = vmul.f32 %v235, %v251
    %v253 = vmul.f32 %v252, %v134
    %v254 = vadd.f32 %v253, %v138
    %255 = vst [vmem:[#allocation8 + $0x4] sm:$0x3] %v254
    %v256 = vld [vmem:[#allocation5 + $0x18] sm:$0xff]
    %v257 = vld [vmem:[#allocation5 + $0x38] sm:$0xff]
    %v258 = vld [vmem:[#allocation5 + $0x58] sm:$0xff]
    %v259 = vld [vmem:[#allocation5 + $0x78] sm:$0xff]
    %v260 = vld [vmem:[#allocation5 + $0x98] sm:$0xff]
    %v261 = vld [vmem:[#allocation5 + $0xb8] sm:$0xff]
    %v262 = vld [vmem:[#allocation5 + $0xd8] sm:$0xff]
    %v263 = vld [vmem:[#allocation5 + $0xf8] sm:$0xff]
    %v264 = vld [vmem:[#allocation7 + $0x3] sm:$0x1]
    %v266 = vperm.slane %v264, 0
    %268 = vmatpush.msra.mxu0 0.0
    %269 = vmatpush.msra.mxu0 0.0
    %270 = vmatpush.msra.mxu0 0.0
    %271 = vmatpush.msra.mxu0 0.0
    %272 = vmatpush.msra.mxu0 0.0
    %273 = vmatpush.msra.mxu0 0.0
    %274 = vmatpush.msra.mxu0 0.0
    %275 = vmatpush.msra.mxu0 0.0
    %276 = vmatpush.msra.mxu0 %v263
    %277 = vmatpush.msra.mxu0 %v262
    %278 = vmatpush.msra.mxu0 %v261
    %279 = vmatpush.msra.mxu0 %v260
    %280 = vmatpush.msra.mxu0 %v259
    %281 = vmatpush.msra.mxu0 %v258
    %282 = vmatpush.msra.mxu0 %v257
    %283 = vmatpush.msra.mxu0 %v256
    %284 = vmatmul.f32.gmra.mxu0 %v81
    %v285 = vpop.f32.mrf.mxu0
    %v286 = vadd.f32 %v266, %v285
    %287 = vdwg.mxu0
    %v288 = vsel %vm103, %v286, 0.0
    %289 = vadd.xlane.f32.xlu0 %v288
    %v290 = vpop.xlane.xlu0 %289
    %v291 = vmul.f32 %v290, %v113
    %v292 = vsub.f32 %v286, %v291
    %v293 = vmul.f32 %v292, %v292
    %v294 = vsel %vm103, %v293, 0.0
    %295 = vadd.xlane.f32.xlu0 %v294
    %v296 = vpop.xlane.xlu0 %295
    %v297 = vmul.f32 %v296, 0.0078125
    %v298 = vadd.f32 %v297, 1e-05
    %v299 = vrsqrt.pop %v298
    %v300 = vmul.f32 %v299, %v298
    %v301 = vmul.f32 %v300, %v299
    %v302 = vmul.f32 0.5, %v301
    %v303 = vsub.f32 1.5, %v302
    %v304 = vmul.f32 %v299, %v303
    %vm305 = vweird.f32 %v298
    %vm306 = vweird.f32 %v299
    %vm307 = vmor %vm305, %vm306
    %v308 = vsel %vm307, %v299, %v304
    %v309 = vmul.f32 %v292, %v308
    %v310 = vmul.f32 %v309, %v134
    %v311 = vadd.f32 %v310, %v138
    %312 = vst [vmem:[#allocation8 + $0x6] sm:$0x3] %v311
    // Predicated region
    $region34: #{tpu_custom_call.1} parent=1 // pred_check
      _
    $region35: #{tpu_custom_call.1} parent=1 // pred_check_branch
      %314 = sbr.rel (0) target = $region37
    $region36: #{tpu_custom_call.1} parent=1 // pred_region
      %316 = vsyncadd [#allocation4], 0
      %s318 = sshll.u32 [#allocation8], 4
      %s319 = int_to_ptr.vmem [resolvable:$true] %s318
      %s320 = sshll.u32 %s5, 4
      %s321 = int_to_ptr.hbm [resolvable:$true] %s320
      %323 = dma.vmem_to_hbm [thread:$0]  %s319, 128, %s321, [#allocation4]
    $region37: #{tpu_custom_call.1} parent=1 // pred_fallthru
      _
    // Predicated region
    $region38: #{tpu_custom_call.1} parent=1 // pred_check
      _
    $region39: #{tpu_custom_call.1} parent=1 // pred_check_branch
      %325 = sbr.rel (0) target = $region41
    $region40: #{tpu_custom_call.1} parent=1 // pred_region
      %327 = dma.done [#allocation4], 128
    $region41: #{tpu_custom_call.1} parent=1 // pred_fallthru
      _
    %328 = vsyncpa [#allocation3], 1
    %329 = vsyncpa [#allocation6], 1
    %330 = vsyncpa [#allocation4], 1

</llo_original>
